<compile_context>
chip_gen: v6e
topology: v6e:2x2x1
jax: 0.10.0
libtpu: 0.0.40
codegen_flags: <defaults>
</compile_context>

<pallas_src>
import jax
import jax.numpy as jnp
from jax.experimental import pallas as pl
from jax.experimental.pallas import tpu as pltpu

EPS = 1e-5  # nn.BatchNorm2d default eps
_VMEM_LIMIT = 32 * 1024 * 1024  # safe on v5e/v6e/v7x


def _conv1x1(w, x):
    """w: (Cout, Cin), x: (Cin, T) -> (Cout, T) via unrolled broadcast-FMA (VPU)."""
    cout, cin = w.shape
    y = w[:, 0:1] * x[0:1, :]
    for c in range(1, cin):
        y = y + w[:, c:c + 1] * x[c:c + 1, :]
    return y


def _stats_kernel(x_ref, w_ref, stats_ref):
    # x_ref: (1, Cin, T)  w_ref: (Cout, Cin)  stats_ref: (Cout, 2) accumulator
    @pl.when((pl.program_id(0) == 0) & (pl.program_id(1) == 0))
    def _():
        stats_ref[...] = jnp.zeros_like(stats_ref)

    y = _conv1x1(w_ref[...], x_ref[0])                      # (Cout, T), f32
    stats_ref[:, 0:1] += jnp.sum(y, axis=1, keepdims=True)
    stats_ref[:, 1:2] += jnp.sum(y * y, axis=1, keepdims=True)


def _make_norm_kernel(m_total):
    inv_m = 1.0 / float(m_total)

    def norm_kernel(x_ref, w_ref, stats_ref, o_ref):
        # x_ref: (1, Cin, T)  w_ref: (Cout, Cin)  stats_ref: (Cout, 2)  o_ref: (1, Cout, T)
        y = _conv1x1(w_ref[...], x_ref[0])                  # (Cout, T)
        mean = stats_ref[:, 0:1] * inv_m                    # (Cout, 1)
        var = stats_ref[:, 1:2] * inv_m - mean * mean       # biased variance
        var = jnp.maximum(var, 0.0)                         # guard fp cancellation
        scale = jax.lax.rsqrt(var + EPS) * 255.0
        o_ref[0] = (y - mean) * scale

    return norm_kernel


def _pick_tile(hw, target=16384):
    """Largest multiple of 128 that divides hw and is <= target; else full hw."""
    if hw % 128 != 0:
        return hw
    t = (min(target, hw) // 128) * 128
    while hw % t != 0:
        t -= 128
    return t


def simple_net_forward(x_nchw, weight, bias=None):
    """x_nchw: (N, Cin, H, W) f32; weight: (Cout, Cin) f32 (1x1 kernel squeezed);
    bias: (Cout,) unused (exactly cancelled by the BatchNorm mean subtraction).
    Returns (N, Cout, H, W) f32 = BatchNorm2d(conv1x1(x)) * 255 (training-mode stats)."""
    del bias  # cancelled by BN mean subtraction (gamma=1, beta=0 default init)
    n, cin, h, w = x_nchw.shape
    cout = weight.shape[0]
    hw = h * w
    m = n * hw

    x = x_nchw.reshape(n, cin, hw)          # free reshape, stays channel-major
    w_mat = weight.astype(jnp.float32)      # (Cout, Cin), used as-is (no transpose)

    t = _pick_tile(hw)
    grid = (n, hw // t)

    # Pass 1: per-channel sum / sum-of-squares over all N*H*W pixels.
    stats = pl.pallas_call(
        _stats_kernel,
        out_shape=jax.ShapeDtypeStruct((cout, 2), jnp.float32),
        grid=grid,
        in_specs=[
            pl.BlockSpec((1, cin, t), lambda b, j: (b, 0, j)),
            pl.BlockSpec((cout, cin), lambda b, j: (0, 0)),
        ],
        out_specs=pl.BlockSpec((cout, 2), lambda b, j: (0, 0)),
        compiler_params=pltpu.CompilerParams(
            dimension_semantics=("arbitrary", "arbitrary"),
            vmem_limit_bytes=_VMEM_LIMIT,
        ),
    )(x, w_mat)

    # Pass 2: recompute the cheap conv per tile, normalize, scale by 255, write output
    # already in (N, Cout, H*W) so no post-transpose is needed.
    out = pl.pallas_call(
        _make_norm_kernel(m),
        out_shape=jax.ShapeDtypeStruct((n, cout, hw), jnp.float32),
        grid=grid,
        in_specs=[
            pl.BlockSpec((1, cin, t), lambda b, j: (b, 0, j)),
            pl.BlockSpec((cout, cin), lambda b, j: (0, 0)),
            pl.BlockSpec((cout, 2), lambda b, j: (0, 0)),
        ],
        out_specs=pl.BlockSpec((1, cout, t), lambda b, j: (b, 0, j)),
        compiler_params=pltpu.CompilerParams(
            dimension_semantics=("parallel", "parallel"),
            vmem_limit_bytes=_VMEM_LIMIT,
        ),
    )(x, w_mat, stats)

    return out.reshape(n, cout, h, w)


def _reference(x_nchw, weight, bias):
    """Pure-JAX reference matching the PyTorch module forward."""
    y = jnp.einsum("nchw,oc->nohw", x_nchw, weight) + bias[None, :, None, None]
    mean = jnp.mean(y, axis=(0, 2, 3), keepdims=True)
    var = jnp.mean((y - mean) ** 2, axis=(0, 2, 3), keepdims=True)  # biased var
    return (y - mean) / jnp.sqrt(var + EPS) * 255.0


if __name__ == "__main__":
    key = jax.random.PRNGKey(0)
    k_x, k_w, k_b = jax.random.split(key, 3)

    N, CIN, H, W = 2, 4, 16, 16
    COUT = 3

    x = jax.random.normal(k_x, (N, CIN, H, W), dtype=jnp.float32)
    # 1x1 conv weight (Cout, Cin, 1, 1) squeezed to (Cout, Cin); bias (Cout,)
    conv_w = jax.random.normal(k_w, (COUT, CIN), dtype=jnp.float32) * 0.1
    conv_b = jax.random.normal(k_b, (COUT,), dtype=jnp.float32) * 0.1

    out = simple_net_forward(x, conv_w, conv_b)
    jax.block_until_ready(out)

    assert out.shape == (N, COUT, H, W), out.shape

    ref = _reference(x, conv_w, conv_b)
    assert jnp.allclose(out, ref, rtol=1e-3, atol=1e-2), float(jnp.max(jnp.abs(out - ref)))

    print("KERNEL_OK")
</pallas_src>

<mosaic_0001>
module attributes {stable_mosaic.version = 11 : i64} {
  func.func @_stats_kernel(%arg0: i32, %arg1: i32, %arg2: memref<1x4x256xf32, #tpu.memory_space<vmem>>, %arg3: memref<3x4xf32, #tpu.memory_space<vmem>>, %arg4: memref<3x2xf32, #tpu.memory_space<vmem>>) attributes {dimension_semantics = [#tpu.dimension_semantics<arbitrary>, #tpu.dimension_semantics<arbitrary>], iteration_bounds = array<i64: 2, 1>, scalar_prefetch = 0 : i64, scratch_operands = 0 : i64, tpu.core_type = #tpu.core_type<tc>, window_params = [{transform_indices = @transform_0, window_bounds = array<i64: 1, 4, 256>}, {pipeline_mode = #tpu.pipeline_mode<synchronous>, transform_indices = @transform_1, window_bounds = array<i64: 3, 4>}, {pipeline_mode = #tpu.pipeline_mode<synchronous>, transform_indices = @transform_2, window_bounds = array<i64: 3, 2>}]} {
    %c0_i32 = arith.constant 0 : i32
    %0 = arith.cmpi eq, %arg0, %c0_i32 : i32
    %c0_i32_0 = arith.constant 0 : i32
    %1 = arith.cmpi eq, %arg1, %c0_i32_0 : i32
    %2 = arith.andi %0, %1 : i1
    %3 = arith.extui %2 : i1 to i32
    %c0_i32_1 = arith.constant 0 : i32
    %4 = arith.cmpi ne, %3, %c0_i32_1 : i32
    scf.if %4 {
      %cst_14 = arith.constant 0.000000e+00 : f32
      %42 = vector.broadcast %cst_14 : f32 to vector<3x2xf32>
      %c0_15 = arith.constant 0 : index
      %c0_16 = arith.constant 0 : index
      %43 = vector.load %arg4[%c0_15, %c0_16] : memref<3x2xf32, #tpu.memory_space<vmem>>, vector<3x2xf32>
      tpu.vector_store %arg4[%c0_15, %c0_16], %42 {strides = array<i32>} : memref<3x2xf32, #tpu.memory_space<vmem>>, vector<3x2xf32>,
    } else {
    }
    %c0 = arith.constant 0 : index
    %c0_2 = arith.constant 0 : index
    %5 = vector.load %arg3[%c0, %c0_2] : memref<3x4xf32, #tpu.memory_space<vmem>>, vector<3x4xf32>
    %c0_3 = arith.constant 0 : index
    %c0_4 = arith.constant 0 : index
    %c0_5 = arith.constant 0 : index
    %6 = vector.load %arg2[%c0_3, %c0_4, %c0_5] : memref<1x4x256xf32, #tpu.memory_space<vmem>>, vector<1x4x256xf32>
    %7 = vector.shape_cast %6 : vector<1x4x256xf32> to vector<4x256xf32>
    %8 = vector.extract_strided_slice %5 {offsets = [0, 0], sizes = [3, 1], strides = [1, 1]} : vector<3x4xf32> to vector<3x1xf32>
    %9 = vector.extract_strided_slice %7 {offsets = [0, 0], sizes = [1, 256], strides = [1, 1]} : vector<4x256xf32> to vector<1x256xf32>
    %10 = vector.broadcast %8 : vector<3x1xf32> to vector<3x256xf32>
    %11 = vector.broadcast %9 : vector<1x256xf32> to vector<3x256xf32>
    %12 = arith.mulf %10, %11 : vector<3x256xf32>
    %13 = vector.extract_strided_slice %5 {offsets = [0, 1], sizes = [3, 1], strides = [1, 1]} : vector<3x4xf32> to vector<3x1xf32>
    %14 = vector.extract_strided_slice %7 {offsets = [1, 0], sizes = [1, 256], strides = [1, 1]} : vector<4x256xf32> to vector<1x256xf32>
    %15 = vector.broadcast %13 : vector<3x1xf32> to vector<3x256xf32>
    %16 = vector.broadcast %14 : vector<1x256xf32> to vector<3x256xf32>
    %17 = arith.mulf %15, %16 : vector<3x256xf32>
    %18 = arith.addf %12, %17 : vector<3x256xf32>
    %19 = vector.extract_strided_slice %5 {offsets = [0, 2], sizes = [3, 1], strides = [1, 1]} : vector<3x4xf32> to vector<3x1xf32>
    %20 = vector.extract_strided_slice %7 {offsets = [2, 0], sizes = [1, 256], strides = [1, 1]} : vector<4x256xf32> to vector<1x256xf32>
    %21 = vector.broadcast %19 : vector<3x1xf32> to vector<3x256xf32>
    %22 = vector.broadcast %20 : vector<1x256xf32> to vector<3x256xf32>
    %23 = arith.mulf %21, %22 : vector<3x256xf32>
    %24 = arith.addf %18, %23 : vector<3x256xf32>
    %25 = vector.extract_strided_slice %5 {offsets = [0, 3], sizes = [3, 1], strides = [1, 1]} : vector<3x4xf32> to vector<3x1xf32>
    %26 = vector.extract_strided_slice %7 {offsets = [3, 0], sizes = [1, 256], strides = [1, 1]} : vector<4x256xf32> to vector<1x256xf32>
    %27 = vector.broadcast %25 : vector<3x1xf32> to vector<3x256xf32>
    %28 = vector.broadcast %26 : vector<1x256xf32> to vector<3x256xf32>
    %29 = arith.mulf %27, %28 : vector<3x256xf32>
    %30 = arith.addf %24, %29 : vector<3x256xf32>
    %c0_6 = arith.constant 0 : index
    %c0_7 = arith.constant 0 : index
    %31 = vector.load %arg4[%c0_6, %c0_7] : memref<3x2xf32, #tpu.memory_space<vmem>>, vector<3x1xf32>
    %cst = arith.constant dense<0.000000e+00> : vector<3xf32>
    %32 = vector.multi_reduction <add>, %30, %cst [1] : vector<3x256xf32> to vector<3xf32>
    %33 = vector.shape_cast %32 : vector<3xf32> to vector<3x1xf32>
    %34 = arith.addf %31, %33 : vector<3x1xf32>
    %c0_8 = arith.constant 0 : index
    %c0_9 = arith.constant 0 : index
    %35 = vector.load %arg4[%c0_8, %c0_9] : memref<3x2xf32, #tpu.memory_space<vmem>>, vector<3x1xf32>
    tpu.vector_store %arg4[%c0_8, %c0_9], %34 {strides = array<i32>} : memref<3x2xf32, #tpu.memory_space<vmem>>, vector<3x1xf32>,
    %c0_10 = arith.constant 0 : index
    %c1 = arith.constant 1 : index
    %36 = vector.load %arg4[%c0_10, %c1] : memref<3x2xf32, #tpu.memory_space<vmem>>, vector<3x1xf32>
    %37 = arith.mulf %30, %30 : vector<3x256xf32>
    %cst_11 = arith.constant dense<0.000000e+00> : vector<3xf32>
    %38 = vector.multi_reduction <add>, %37, %cst_11 [1] : vector<3x256xf32> to vector<3xf32>
    %39 = vector.shape_cast %38 : vector<3xf32> to vector<3x1xf32>
    %40 = arith.addf %36, %39 : vector<3x1xf32>
    %c0_12 = arith.constant 0 : index
    %c1_13 = arith.constant 1 : index
    %41 = vector.load %arg4[%c0_12, %c1_13] : memref<3x2xf32, #tpu.memory_space<vmem>>, vector<3x1xf32>
    tpu.vector_store %arg4[%c0_12, %c1_13], %40 {strides = array<i32>} : memref<3x2xf32, #tpu.memory_space<vmem>>, vector<3x1xf32>,
    return
  }
  func.func @transform_0(%arg0: i32, %arg1: i32) -> (i32, i32, i32) {
    %c0_i32 = arith.constant 0 : i32
    %c0_i32_0 = arith.constant 0 : i32
    return %arg0, %c0_i32, %arg1 : i32, i32, i32
  }
  func.func @transform_1(%arg0: i32, %arg1: i32) -> (i32, i32) {
    %c0_i32 = arith.constant 0 : i32
    %c0_i32_0 = arith.constant 0 : i32
    %c0_i32_1 = arith.constant 0 : i32
    return %c0_i32, %c0_i32_0 : i32, i32
  }
  func.func @transform_2(%arg0: i32, %arg1: i32) -> (i32, i32) {
    %c0_i32 = arith.constant 0 : i32
    %c0_i32_0 = arith.constant 0 : i32
    %c0_i32_1 = arith.constant 0 : i32
    return %c0_i32, %c0_i32_0 : i32, i32
  }
}

</mosaic_0001>

<llo_original>
// kernel: tpu_custom_call.1
$region0: #{tpu_custom_call.1}
  #allocation0 [shape = 'u32[]', space=smem, size = 0x4, offset = 0x4, fixed_abs, tag = 'smem constant byte address 0x4 - core index']
  #allocation1 [shape = 'u32[144,128]{1,0:T(1,128)}', space=vmem, size = 0x12000, scoped, tag = 'internal scratch']
  %s0 = inlined_call_operand.hbm [shape: f32[2,4,256], index: 0, kind: input, shape index: {}]
  %s1 = inlined_call_operand.hbm [shape: f32[3,4], index: 1, kind: input, shape index: {}]
  %s2 = inlined_call_operand.vmem [shape: f32[3,2], index: 2, kind: output, shape index: {}]
  %s3 = sld [smem:[#allocation0]]
  $region53: #{tpu_custom_call.1} parent=0
    _
  %s5 = ssub.s32 1, %s3
  %s6 = scalar_select 0, %s5, %s3
  $region1: #{tpu_custom_call.1} parent=0
    #allocation2 [shape = 'u8[8192]{0}', space=vmem, size = 0x2000, scoped, tag = 'input window, operand 0']
    #allocation3 [shape = 's32[2]{0}', space=sflag, size = 0x8, scoped, tag = 'scoped memory for tpu_custom_call.1']
    #allocation4 [shape = 'u8[2048]{0}', space=vmem, size = 0x800, scoped, tag = 'input window, operand 1, single buffered']
    #allocation5 [shape = 's32[1]{0}', space=sflag, size = 0x4, scoped, tag = 'scoped memory for tpu_custom_call.1']
    %7 = vsyncpa [#allocation3], 0
    %s8 = scalar_lea.sflag [#allocation3], 1
    %9 = vsyncpa %s8, 0
    %10 = vsyncpa [#allocation5], 0
    loop: start=0, step=1, limit=4
    $region2: #{tpu_custom_call.1} parent=1 // loop_pre_header
      _
    $region3: #{tpu_custom_call.1} parent=1 // loop_header
      %s12 = sphi 0, %s16
      %p13 = scmp.ge.s32.totalorder %s12, 4
      %s19 = sphi 0, %s31
      %s20 = sphi 0, %s27
      %s21 = sphi 0, %s19
      %s22 = sphi 0, %s20
      %s23 = sphi 0, %s21
      %s24 = sphi 0, %s22
      %s36 = sphi 0, %s38
      %s39 = sphi 0, %s36
      %s40 = sphi 0, %s39
      %s56 = sphi 0, %s40
      %s60 = sphi 0, %s60
      %s62 = sphi 0, %s60
      %s63 = sphi 0, %s62
      %s77 = sphi 0, %s63
      %s81 = sphi 0, %s81
      %s83 = sphi 0, %s81
      %s84 = sphi 0, %s83
      %s98 = sphi 0, %s84
    $region4: #{tpu_custom_call.1} parent=1 // loop_header_branch
      %15 = sbr.rel (%p13) target = $region8
    $region5: #{tpu_custom_call.1} parent=1 // loop_body
      %s17 = ssub.s32 %s12, 1
      %s18 = ssub.s32 %s12, 2
      %s25 = sadd.s32 1, %s20
      %p26 = scmp.ge.s32.totalorder %s25, 1
      %s27 = scalar_select %p26, 0, %s25
      %s28 = sadd.s32 1, %s19
      %s29 = scalar_select %p26, %s28, %s19
      %p30 = scmp.ge.s32.totalorder %s29, 2
      %s31 = scalar_select %p30, 0, %s29
      %s32 = ssub.s32 %s19, %s31
      %s33 = ssub.s32 %s20, %s27
      %s34 = sor.u32 %s32, %s33
      %p35 = scmp.eq.s32.totalorder %s34, 0
      %s37 = sadd.s32 %s36, 1
      %s38 = scalar_select %p35, %s36, %s37
      %p41 = pneg %p35
      %p42 = scmp.eq.s32.totalorder %s12, 1
      %p43 = por %p41, %p42
      %p44 = scmp.ne.s32.totalorder %s36, %s39
      %p45 = scmp.eq.s32.totalorder %s12, 0
      %p46 = por %p44, %p45
      %p47 = scmp.ne.s32.totalorder %s36, %s39
      %p48 = scmp.eq.s32.totalorder %s17, 1
      %p49 = por %p47, %p48
      %p50 = scmp.ne.s32.totalorder %s39, %s40
      %p51 = scmp.eq.s32.totalorder %s17, 0
      %p52 = por %p50, %p51
      %p53 = scmp.ne.s32.totalorder %s39, %s40
      %p54 = scmp.eq.s32.totalorder %s18, 1
      %p55 = por %p53, %p54
      %p57 = scmp.ne.s32.totalorder %s40, %s56
      %p58 = scmp.eq.s32.totalorder %s18, 0
      %p59 = por %p57, %p58
      %s61 = sadd.s32 %s60, 1
      %p64 = scmp.eq.s32.totalorder %s12, 1
      %p65 = scmp.ne.s32.totalorder %s60, %s62
      %p66 = scmp.eq.s32.totalorder %s12, 0
      %p67 = por %p65, %p66
      %p68 = scmp.ne.s32.totalorder %s60, %s62
      %p69 = scmp.eq.s32.totalorder %s17, 1
      %p70 = por %p68, %p69
      %p71 = scmp.ne.s32.totalorder %s62, %s63
      %p72 = scmp.eq.s32.totalorder %s17, 0
      %p73 = por %p71, %p72
      %p74 = scmp.ne.s32.totalorder %s62, %s63
      %p75 = scmp.eq.s32.totalorder %s18, 1
      %p76 = por %p74, %p75
      %p78 = scmp.ne.s32.totalorder %s63, %s77
      %p79 = scmp.eq.s32.totalorder %s18, 0
      %p80 = por %p78, %p79
      %s82 = sadd.s32 %s81, 1
      %p85 = scmp.eq.s32.totalorder %s12, 1
      %p86 = scmp.ne.s32.totalorder %s81, %s83
      %p87 = scmp.eq.s32.totalorder %s12, 0
      %p88 = por %p86, %p87
      %p89 = scmp.ne.s32.totalorder %s81, %s83
      %p90 = scmp.eq.s32.totalorder %s17, 1
      %p91 = por %p89, %p90
      %p92 = scmp.ne.s32.totalorder %s83, %s84
      %p93 = scmp.eq.s32.totalorder %s17, 0
      %p94 = por %p92, %p93
      %p95 = scmp.ne.s32.totalorder %s83, %s84
      %p96 = scmp.eq.s32.totalorder %s18, 1
      %p97 = por %p95, %p96
      %p99 = scmp.ne.s32.totalorder %s84, %s98
      %p100 = scmp.eq.s32.totalorder %s18, 0
      %p101 = por %p99, %p100
      %p102 = scmp.le.s32.totalorder 1, %s12
      %p103 = scmp.lt.s32.totalorder %s12, 3
      %p104 = pnand %p102, %p103
      %p105 = pneg %p104
      // Predicated region
      $region9: #{tpu_custom_call.1} parent=5 // pred_check
        _
      $region10: #{tpu_custom_call.1} parent=5 // pred_check_branch
        %107 = sbr.rel (%p104) target = $region12
      $region11: #{tpu_custom_call.1} parent=5 // pred_region
        %s108 = ssub.s32 %s12, 1
        // Predicated region
        $region13: #{tpu_custom_call.1} parent=11 // pred_check
          %p109 = pneg %p73
        $region14: #{tpu_custom_call.1} parent=11 // pred_check_branch
          %111 = sbr.rel (%p109) target = $region16
        $region15: #{tpu_custom_call.1} parent=11 // pred_region
          %s113 = ssub.s32 64, 64
          %114 = vsyncadd [#allocation5], %s113
          %s116 = sshll.u32 [#allocation4], 4
          %s117 = int_to_ptr.vmem [resolvable:$true] %s116
          %119 = dma.hbm_to_vmem [thread:$0]  %s1, 64, %s117, [#allocation5]
        $region16: #{tpu_custom_call.1} parent=11 // pred_fallthru
          _
      $region12: #{tpu_custom_call.1} parent=5 // pred_fallthru
        _
      %p120 = scmp.lt.s32.totalorder %s12, 2
      // Predicated region
      $region17: #{tpu_custom_call.1} parent=5 // pred_check
        %p121 = pneg %p120
      $region18: #{tpu_custom_call.1} parent=5 // pred_check_branch
        %123 = sbr.rel (%p121) target = $region20
      $region19: #{tpu_custom_call.1} parent=5 // pred_region
        // Predicated region
        $region21: #{tpu_custom_call.1} parent=19 // pred_check
          %p124 = pneg %p46
        $region22: #{tpu_custom_call.1} parent=19 // pred_check_branch
          %126 = sbr.rel (%p124) target = $region24
        $region23: #{tpu_custom_call.1} parent=19 // pred_region
          %s127 = sand.u32 %s36, 1
          %s128 = scalar_lea.sflag [#allocation3], %s127
          %s129 = sand.u32 %s36, 1
          %s130 = smul.addr %s129, 8
          %s131 = scalar_lea.vmem [#allocation2], %s130
          %s132 = smul.u32 2, %s20
          %s134 = ssub.s32 128, 128
          %135 = vsyncadd %s128, %s134
          %s136 = smul.addr %s19, 2
          %s137 = sadd.s32 %s132, %s136
          %s138 = smul.addr %s137, 64
          %s139 = scalar_lea.hbm %s0, %s138
          %s141 = sshll.u32 %s131, 4
          %s142 = int_to_ptr.vmem [resolvable:$true] %s141
          %144 = dma.hbm_to_vmem [thread:$0]  %s139, 128, %s142, %s128
        $region24: #{tpu_custom_call.1} parent=19 // pred_fallthru
          _
      $region20: #{tpu_custom_call.1} parent=5 // pred_fallthru
        _
      %p145 = scmp.le.s32.totalorder 1, %s12
      %p146 = scmp.lt.s32.totalorder %s12, 3
      %p147 = pnand %p145, %p146
      %p148 = pneg %p147
      // Predicated region
      $region25: #{tpu_custom_call.1} parent=5 // pred_check
        _
      $region26: #{tpu_custom_call.1} parent=5 // pred_check_branch
        %150 = sbr.rel (%p147) target = $region28
      $region27: #{tpu_custom_call.1} parent=5 // pred_region
        %s151 = ssub.s32 %s12, 1
        %s152 = sand.u32 %s39, 1
        %s153 = scalar_lea.sflag [#allocation3], %s152
        %s154 = sand.u32 %s39, 1
        %s155 = smul.addr %s154, 8
        %s156 = scalar_lea.vmem [#allocation2], %s155
        // Predicated region
        $region29: #{tpu_custom_call.1} parent=27 // pred_check
          %p157 = pneg %p52
        $region30: #{tpu_custom_call.1} parent=27 // pred_check_branch
          %159 = sbr.rel (%p157) target = $region32
        $region31: #{tpu_custom_call.1} parent=27 // pred_region
          %160 = dma.done %s153, 128
        $region32: #{tpu_custom_call.1} parent=27 // pred_fallthru
          _
        // Predicated region
        $region33: #{tpu_custom_call.1} parent=27 // pred_check
          %p161 = pneg %p73
        $region34: #{tpu_custom_call.1} parent=27 // pred_check_branch
          %163 = sbr.rel (%p161) target = $region36
        $region35: #{tpu_custom_call.1} parent=27 // pred_region
          %164 = dma.done [#allocation5], 64
        $region36: #{tpu_custom_call.1} parent=27 // pred_fallthru
          _
        %s165 = sand.u32 %s39, 1
        %s166 = scalar_lea.sflag [#allocation3], %s165
        %s167 = sand.u32 %s39, 1
        %s168 = smul.addr %s167, 8
        %s169 = scalar_lea.vmem [#allocation2], %s168
        %p170 = pneg %p52
        %p171 = pneg %p49
        %p172 = pneg %p73
        %p173 = pneg %p70
        %p174 = pneg %p94
        %p175 = pneg %p91
        %s176 = smul.u32 2, %s22
        %p177 = scmp.eq.s32.totalorder %s21, 0
        %p178 = scmp.eq.s32.totalorder %s22, 0
        %p179 = pnand %p177, %p178
        %p180 = pneg %p179
        // Predicated region
        $region37: #{tpu_custom_call.1} parent=27 // pred_check
          _
        $region38: #{tpu_custom_call.1} parent=27 // pred_check_branch
          %182 = sbr.rel (%p179) target = $region40
        $region39: #{tpu_custom_call.1} parent=27 // pred_region
          %vm183 = vcmask 10240
          %184 = vst.msk [vmem:[%s2] sm:$0x7] %vm183, 0.0
        $region40: #{tpu_custom_call.1} parent=27 // pred_fallthru
          _
        %v185 = vld [vmem:[#allocation4] sm:$0x7]
        %v186 = vld [vmem:[%s156] sm:$0xff]
        %188 = vset.pattern.permute.xlu0 0
        %189 = vperm.xlu0 %188, %v185
        %v190 = vpop.permute.xlu0 %189
        %v193 = vlaneseq
        %v194 = vshrl.u32 %v193, 7
        %v195 = vsub.s32 0, %v194
        %v196 = vrot.slane %v186, %v195
        %v197 = vlaneseq
        %v198 = vshrl.u32 %v197, 7
        %v199 = vsub.s32 4, %v198
        %v200 = vrot.slane %v186, %v199
        %v203 = vlaneseq
        %v204 = vshrl.u32 %v203, 7
        %v205 = vsub.s32 0, %v204
        %v206 = vrot.slane %v196, %v205
        %v207 = vlaneseq
        %v208 = vshrl.u32 %v207, 7
        %v209 = vsub.s32 0, %v208
        %v210 = vrot.slane %v200, %v209
        %v211 = vmul.f32 %v190, %v206
        %v212 = vmul.f32 %v190, %v210
        %213 = vset.pattern.permute.xlu0 1
        %214 = vperm.xlu0 %213, %v185
        %v215 = vpop.permute.xlu0 %214
        %v217 = vlaneseq
        %v218 = vshrl.u32 %v217, 7
        %v219 = vsub.s32 1, %v218
        %v220 = vrot.slane %v186, %v219
        %v221 = vlaneseq
        %v222 = vshrl.u32 %v221, 7
        %v223 = vsub.s32 5, %v222
        %v224 = vrot.slane %v186, %v223
        %v227 = vlaneseq
        %v228 = vshrl.u32 %v227, 7
        %v229 = vsub.s32 1, %v228
        %v230 = vrot.slane %v220, %v229
        %v231 = vlaneseq
        %v232 = vshrl.u32 %v231, 7
        %v233 = vsub.s32 1, %v232
        %v234 = vrot.slane %v224, %v233
        %v235 = vmul.f32 %v215, %v230
        %v236 = vmul.f32 %v215, %v234
        %v237 = vadd.f32 %v211, %v235
        %v238 = vadd.f32 %v212, %v236
        %239 = vset.pattern.permute.xlu0 2
        %240 = vperm.xlu0 %239, %v185
        %v241 = vpop.permute.xlu0 %240
        %v243 = vlaneseq
        %v244 = vshrl.u32 %v243, 7
        %v245 = vsub.s32 2, %v244
        %v246 = vrot.slane %v186, %v245
        %v247 = vlaneseq
        %v248 = vshrl.u32 %v247, 7
        %v249 = vsub.s32 6, %v248
        %v250 = vrot.slane %v186, %v249
        %v253 = vlaneseq
        %v254 = vshrl.u32 %v253, 7
        %v255 = vsub.s32 2, %v254
        %v256 = vrot.slane %v246, %v255
        %v257 = vlaneseq
        %v258 = vshrl.u32 %v257, 7
        %v259 = vsub.s32 2, %v258
        %v260 = vrot.slane %v250, %v259
        %v261 = vmul.f32 %v241, %v256
        %v262 = vmul.f32 %v241, %v260
        %v263 = vadd.f32 %v237, %v261
        %v264 = vadd.f32 %v238, %v262
        %265 = vset.pattern.permute.xlu0 3
        %266 = vperm.xlu0 %265, %v185
        %v267 = vpop.permute.xlu0 %266
        %v269 = vlaneseq
        %v270 = vshrl.u32 %v269, 7
        %v271 = vsub.s32 3, %v270
        %v272 = vrot.slane %v186, %v271
        %v273 = vlaneseq
        %v274 = vshrl.u32 %v273, 7
        %v275 = vsub.s32 7, %v274
        %v276 = vrot.slane %v186, %v275
        %v279 = vlaneseq
        %v280 = vshrl.u32 %v279, 7
        %v281 = vsub.s32 3, %v280
        %v282 = vrot.slane %v272, %v281
        %v283 = vlaneseq
        %v284 = vshrl.u32 %v283, 7
        %v285 = vsub.s32 3, %v284
        %v286 = vrot.slane %v276, %v285
        %v287 = vmul.f32 %v267, %v282
        %v288 = vmul.f32 %v267, %v286
        %v289 = vadd.f32 %v263, %v287
        %v290 = vadd.f32 %v264, %v288
        %v291 = vld [vmem:[%s2] sm:$0x7]
        %vm292 = vcmask 1042432
        %v293 = vsel %vm292, %v289, 0.0
        %v294 = vsel %vm292, %v290, 0.0
        %v295 = vadd.f32 %v293, %v294
        %296 = vadd.xlane.f32.xlu0 %v295
        %v297 = vpop.xlane.xlu0 %296
        %v298 = vadd.f32 %v291, %v297
        %vm299 = vcmask 2048
        %300 = vst.msk [vmem:[%s2] sm:$0x7] %vm299, %v298
        %v301 = vld [vmem:[%s2] sm:$0x7]
        %v302 = vmul.f32 %v289, %v289
        %v303 = vmul.f32 %v290, %v290
        %v304 = vsel %vm292, %v302, 0.0
        %v305 = vsel %vm292, %v303, 0.0
        %v306 = vadd.f32 %v304, %v305
        %307 = vadd.xlane.f32.xlu0 %v306
        %v308 = vpop.xlane.xlu0 %307
        %v309 = vadd.f32 %v301, %v308
        %vm310 = vcmask 10248
        %311 = vst.msk [vmem:[%s2] sm:$0x7] %vm310, %v309
        // Predicated region
        $region41: #{tpu_custom_call.1} parent=27 // pred_check
          %p312 = pneg %p91
        $region42: #{tpu_custom_call.1} parent=27 // pred_check_branch
          %314 = sbr.rel (%p312) target = $region44
        $region43: #{tpu_custom_call.1} parent=27 // pred_region
          _
        $region44: #{tpu_custom_call.1} parent=27 // pred_fallthru
          _
        // Predicated region
        $region45: #{tpu_custom_call.1} parent=27 // pred_check
          %p315 = pneg %p91
        $region46: #{tpu_custom_call.1} parent=27 // pred_check_branch
          %317 = sbr.rel (%p315) target = $region48
        $region47: #{tpu_custom_call.1} parent=27 // pred_region
          _
        $region48: #{tpu_custom_call.1} parent=27 // pred_fallthru
          _
      $region28: #{tpu_custom_call.1} parent=5 // pred_fallthru
        _
      %p318 = scmp.le.s32.totalorder 2, %s12
      // Predicated region
      $region49: #{tpu_custom_call.1} parent=5 // pred_check
        %p319 = pneg %p318
      $region50: #{tpu_custom_call.1} parent=5 // pred_check_branch
        %321 = sbr.rel (%p319) target = $region52
      $region51: #{tpu_custom_call.1} parent=5 // pred_region
        %s322 = ssub.s32 %s12, 2
      $region52: #{tpu_custom_call.1} parent=5 // pred_fallthru
        _
    $region6: #{tpu_custom_call.1} parent=1 // loop_footer
      %s16 = sadd.s32 1, %s12
    $region7: #{tpu_custom_call.1} parent=1 // loop_footer_branch
      %11 = sbr.rel target = $region3
    $region8: #{tpu_custom_call.1} parent=1 // loop_exit
      _
    %323 = vsyncpa [#allocation3], 1
    %s324 = scalar_lea.sflag [#allocation3], 1
    %325 = vsyncpa %s324, 1
    %326 = vsyncpa [#allocation5], 1

</llo_original>
